<compile_context>
chip_gen: v7x
topology: tpu7x:2x2x1
jax: 0.10.0
libtpu: 0.0.40
codegen_flags: <defaults>
</compile_context>

<pallas_src>
import functools

import numpy as np
import jax
import jax.numpy as jnp
from jax import lax
from jax.experimental import pallas as pl
from jax.experimental.pallas import tpu as pltpu

POS_THRESH = 0.9
ALPHA = 0.2


# ---------------------------------------------------------------------------
# Kernel: one (sample b, N-tile t) step.  Per-sample scratch accumulates across
# the N-tiles; per-sample partial sums are emitted on the last tile of each b.
# ---------------------------------------------------------------------------
def _scale_invariant_loss_kernel(num_gt_ref,   # SMEM (B,)  int32  (scalar prefetch)
                                 prop_ref,     # VMEM (2, TN) f32: row0=start, row1=end
                                 gt_ref,       # VMEM (1, M_pad, 2) f32 (padded gts)
                                 pred_ref,     # VMEM (1, 1, TN) model scores
                                 gt_iou_ref,   # VMEM (1, 1, TN) f32 out
                                 part_ref,     # VMEM (1, 1, 128) f32 out (per-sample partials)
                                 pos_cnt_ref,  # VMEM (M_pad, 1) f32: per-gt positive count
                                 a_ref,        # VMEM (M_pad, 1) f32: per-gt positive-bce sum
                                 ssum_ref,     # SMEM (2,) f32: [num_pos_b, sum_bce_b]
                                 *, pos_thresh, n_valid, mask_lanes):
    b = pl.program_id(0)
    nt = pl.program_id(1)
    nt_last = pl.num_programs(1) - 1

    # ---- per-sample scratch reset on the first N-tile of each sample ----------
    @pl.when(nt == 0)
    def _init():
        pos_cnt_ref[...] = jnp.zeros_like(pos_cnt_ref)
        a_ref[...] = jnp.zeros_like(a_ref)
        ssum_ref[0] = jnp.float32(0.0)
        ssum_ref[1] = jnp.float32(0.0)

    ps = prop_ref[0:1, :]                                  # (1, TN) proposal starts
    pe = prop_ref[1:2, :]                                  # (1, TN) proposal ends
    gseg = gt_ref[0]                                       # (M_pad, 2)
    gs = gseg[:, 0:1]                                      # (M_pad, 1) gt starts
    ge = gseg[:, 1:2]                                      # (M_pad, 1) gt ends
    m_pad = gs.shape[0]
    tn = ps.shape[1]

    ng = num_gt_ref[b]                                     # true #gt segments of this sample
    row = lax.broadcasted_iota(jnp.int32, (m_pad, 1), 0)   # (M, 1) — broadcast, not (M, TN)
    valid_row = row < ng                                   # (M, 1)

    # ---- pairwise 1-D temporal IoU pieces (no divide) --------------------------
    inter = jnp.maximum(jnp.minimum(pe, ge) - jnp.maximum(ps, gs), 0.0)   # (M, TN)
    union = jnp.maximum((pe - ps) + (ge - gs) - inter, 1e-8)              # (M, TN)

    # iou > thresh  <=>  inter > thresh * union   (union > 0)  — no EUP divide
    pos_pred = jnp.logical_and(inter > pos_thresh * union, valid_row)     # (M, TN)
    if mask_lanes:
        lane = lax.broadcasted_iota(jnp.int32, (1, tn), 1) + nt * tn
        valid_lane = lane < n_valid                                       # (1, TN)
        pos_pred = jnp.logical_and(pos_pred, valid_lane)

    pos_f = jnp.where(pos_pred, 1.0, 0.0)                                 # (M, TN)
    pos_mask = jnp.max(pos_f, axis=0, keepdims=True) > 0.5                # (1, TN)

    # ---- argmax over gts via approx-reciprocal ranking; exact winner IoU -------
    rank = jnp.where(valid_row, inter * pl.reciprocal(union, approx=True), -1.0)
    rank_max = jnp.max(rank, axis=0, keepdims=True)                       # (1, TN)
    max_index = jnp.min(jnp.where(rank >= rank_max, row, m_pad),
                        axis=0, keepdims=True)            # first max -> torch tie rule
    win = row == max_index                                                # (M, TN)
    win_inter = jnp.sum(jnp.where(win, inter, 0.0), axis=0, keepdims=True)
    win_union = jnp.sum(jnp.where(win, union, 0.0), axis=0, keepdims=True)
    gt_iou_ref[0] = win_inter / win_union      # ONE exact (1, TN) divide (returned tensor)

    # ---- BCE against pos_mask (log clamp matches F.binary_cross_entropy) -------
    pred = pred_ref[0].astype(jnp.float32)                                # (1, TN)
    log_p = jnp.maximum(jnp.log(pred), -100.0)
    log_1mp = jnp.maximum(jnp.log(1.0 - pred), -100.0)
    bce = jnp.where(pos_mask, -log_p, -log_1mp)                           # (1, TN)
    if mask_lanes:
        bce_valid = jnp.where(valid_lane, bce, 0.0)
    else:
        bce_valid = bce

    # ---- per-sample accumulators across N tiles --------------------------------
    pos_cnt_ref[...] += jnp.sum(pos_f, axis=1, keepdims=True)             # per-gt pos count
    a_contrib = jnp.where(jnp.logical_and(win, pos_mask), bce, 0.0)       # (M, TN)
    a_ref[...] += jnp.sum(a_contrib, axis=1, keepdims=True)               # per-gt pos-bce sum
    ssum_ref[0] += jnp.sum(jnp.where(pos_mask, 1.0, 0.0))                 # num_pos_b
    ssum_ref[1] += jnp.sum(bce_valid)                                     # sum_bce_b

    # ---- emit per-sample partial sums on the last N-tile ------------------------
    @pl.when(nt == nt_last)
    def _emit():
        pos_cnt = pos_cnt_ref[...]                        # (M, 1)
        a = a_ref[...]                                    # (M, 1)
        sum_a = jnp.sum(a)                                # sum over positives of bce
        sum_pos_wtd = jnp.sum(a / jnp.maximum(pos_cnt, 1.0))   # bce / clip(pos_num[argmax],1)
        num_pos_b = ssum_ref[0]
        sum_bce_b = ssum_ref[1]
        sum_neg_bce_b = sum_bce_b - sum_a                 # sum over negatives of bce
        lane = lax.broadcasted_iota(jnp.int32, (1, 128), 1)
        part_ref[0] = (jnp.where(lane == 0, num_pos_b, 0.0)
                       + jnp.where(lane == 1, sum_bce_b, 0.0)
                       + jnp.where(lane == 2, sum_pos_wtd, 0.0)
                       + jnp.where(lane == 3, sum_neg_bce_b, 0.0))


# ---------------------------------------------------------------------------
# Tile planning: VMEM-capacity-aware N tile (generation aware on v7x).
# ---------------------------------------------------------------------------
def _vmem_capacity_bytes():
    try:
        return int(pltpu.get_tpu_info().vmem_capacity_bytes)
    except Exception:
        return 64 * 1024 * 1024            # conservative fallback (v7x per-TensorCore)


def _plan_tiles(n, m_pad, tile_n=None):
    vmem_cap = _vmem_capacity_bytes()
    if tile_n is None:
        budget = min(vmem_cap // 3, 48 << 20)            # cap the live working set
        tn_cap = budget // (10 * 4 * max(m_pad, 8))      # ~10 live (M_pad, TN) f32 temps
        tile_n = max(128, min((tn_cap // 128) * 128, 2048))
    if n <= tile_n:
        tn, n_pad = n, n                                  # single tile == full dim (legal)
    else:
        assert tile_n % 128 == 0, "tile_n must be a multiple of 128 when tiling"
        tn = int(tile_n)
        n_pad = ((n + tn - 1) // tn) * tn
    vmem_limit = int(max(32 << 20, min(vmem_cap - (16 << 20), 100 << 20)))
    return tn, n_pad, vmem_limit


# ---------------------------------------------------------------------------
# Wrapper: pad/stack variable-length gts, pack proposals, one pallas_call,
# then a tiny per-batch scalar combine + degenerate select in plain JAX.
# ---------------------------------------------------------------------------
def scale_invariant_loss(pred, proposals, gt_segments,
                         pos_thresh=POS_THRESH, alpha=ALPHA, tile_n=None):
    """Fused forward of ScaleInvariantLoss. Returns (loss_scalar, gt_ious)."""
    B, N = pred.shape
    assert len(gt_segments) == B

    m_list = [int(g.shape[0]) for g in gt_segments]
    m_pad = max(8, ((max(m_list) + 7) // 8) * 8)          # pad gt count to sublane multiple
    gts = jnp.stack([
        jnp.pad(jnp.asarray(g, jnp.float32), ((0, m_pad - int(g.shape[0])), (0, 0)))
        for g in gt_segments])                                         # (B, m_pad, 2)
    num_gt = jnp.asarray(m_list, jnp.int32)                            # (B,)

    tn, n_pad, vmem_limit = _plan_tiles(N, m_pad, tile_n)
    n_tiles = n_pad // tn

    prop = jnp.asarray(proposals, jnp.float32).T                       # (2, N)
    pred_in = pred
    if n_pad != N:
        prop = jnp.pad(prop, ((0, 0), (0, n_pad - N)))
        pred_in = jnp.pad(pred_in, ((0, 0), (0, n_pad - N)))
    pred3 = pred_in.reshape(B, 1, n_pad)                 # f32 cast happens inside the kernel

    grid_spec = pltpu.PrefetchScalarGridSpec(
        num_scalar_prefetch=1,                           # num_gt -> SMEM
        grid=(B, n_tiles),
        in_specs=[
            pl.BlockSpec((2, tn), lambda b, t, ng: (0, t)),            # shared proposals tile
            pl.BlockSpec((1, m_pad, 2), lambda b, t, ng: (b, 0, 0)),   # this sample's gts
            pl.BlockSpec((1, 1, tn), lambda b, t, ng: (b, 0, t)),      # this sample's pred tile
        ],
        out_specs=(
            pl.BlockSpec((1, 1, tn), lambda b, t, ng: (b, 0, t)),      # gt_iou tile
            pl.BlockSpec((1, 1, 128), lambda b, t, ng: (b, 0, 0)),     # per-sample partials
        ),
        scratch_shapes=[
            pltpu.VMEM((m_pad, 1), jnp.float32),         # per-gt positive count
            pltpu.VMEM((m_pad, 1), jnp.float32),         # per-gt positive-bce sum
            pltpu.SMEM((2,), jnp.float32),               # [num_pos_b, sum_bce_b]
        ],
    )

    gt_iou3, partials = pl.pallas_call(
        functools.partial(_scale_invariant_loss_kernel,
                          pos_thresh=float(pos_thresh),
                          n_valid=int(N), mask_lanes=bool(n_pad != N)),
        grid_spec=grid_spec,
        out_shape=(jax.ShapeDtypeStruct((B, 1, n_pad), jnp.float32),
                   jax.ShapeDtypeStruct((B, 1, 128), jnp.float32)),
        compiler_params=pltpu.CompilerParams(
            # batch axis is fully independent per sample (per-sample outputs, scratch
            # reset at t==0) -> megacore-parallel on v7x; the N-tile axis carries the
            # per-sample accumulators and must stay "arbitrary".
            dimension_semantics=("parallel", "arbitrary"),
            vmem_limit_bytes=vmem_limit),
    )(num_gt, prop, gts, pred3)

    # ---- tiny per-batch combine + degenerate select (plain JAX) ----------------
    num_pos_b = partials[:, 0, 0]                        # (B,)
    sum_bce_b = partials[:, 0, 1]
    sum_pos_wtd_b = partials[:, 0, 2]
    sum_neg_bce_b = partials[:, 0, 3]

    num_neg_b = float(N) - num_pos_b
    m_arr = jnp.asarray(m_list, jnp.float32)
    neg_w_b = jnp.where(num_neg_b > 0.0, m_arr / jnp.maximum(num_neg_b, 1.0), 0.0)
    sum_wtd_b = alpha * sum_pos_wtd_b + (1.0 - alpha) * neg_w_b * sum_neg_bce_b

    num_pos = jnp.sum(num_pos_b)
    total = float(B * N)
    mean_loss = jnp.sum(sum_bce_b) / total               # degenerate path == bce.mean()
    weighted = jnp.sum(sum_wtd_b) / float(B)             # sum(coef*bce*w) / pred.shape[0]
    degenerate = jnp.logical_or(num_pos == 0.0, num_pos == total)
    loss = jnp.where(degenerate, mean_loss, weighted)

    # Note: the PyTorch module returns only mean(loss) in the degenerate case; here the
    # scalar already encodes that via jnp.where and we always return (loss, gt_ious).
    return loss, gt_iou3[:, 0, :N]


# ---------------------------------------------------------------------------
# Pure numpy reference (mirrors the PyTorch semantics) for a sanity check.
# ---------------------------------------------------------------------------
def _reference(pred, proposals, gt_segments, pos_thresh, alpha):
    pred = np.asarray(pred, np.float64)
    proposals = np.asarray(proposals, np.float64)
    gt_ious, weights = [], []
    for gt in gt_segments:
        gt = np.asarray(gt, np.float64)
        ps, pe = proposals[:, 0:1], proposals[:, 1:2]          # (N, 1)
        gs, ge = gt[None, :, 0], gt[None, :, 1]                # (1, M)
        inter = np.maximum(np.minimum(pe, ge) - np.maximum(ps, gs), 0.0)
        union = (pe - ps) + (ge - gs) - inter
        iou = inter / union                                    # (N, M)
        gt_iou = iou.max(axis=1)
        max_idx = iou.argmax(axis=1)
        pos_mask = gt_iou > pos_thresh
        neg_mask = ~pos_mask
        pos_num = (iou > pos_thresh).sum(axis=0)
        w = np.ones_like(gt_iou)
        w[pos_mask] = 1.0 / np.maximum(pos_num[max_idx[pos_mask]], 1)
        w[neg_mask] = gt.shape[0] / neg_mask.sum()
        gt_ious.append(gt_iou)
        weights.append(w)
    gt_ious = np.stack(gt_ious)
    weights = np.stack(weights)
    pmask = (gt_ious > pos_thresh).astype(np.float64)
    nmask = 1.0 - pmask
    bce = -(pmask * np.maximum(np.log(pred), -100.0)
            + nmask * np.maximum(np.log(1.0 - pred), -100.0))
    num_pos, num_neg = pmask.sum(), nmask.sum()
    if num_pos == 0 or num_neg == 0:
        return bce.mean(), gt_ious
    coef = alpha * pmask + (1.0 - alpha) * nmask
    return (coef * bce * weights).sum() / pred.shape[0], gt_ious


def _run_case(key, B, N, M_list, tile_n=None, name=""):
    keys = jax.random.split(key, 3 + B)
    k1, k2, k5, gks = keys[0], keys[1], keys[2], keys[3:]
    p_start = jax.random.uniform(k1, (N,), minval=0.0, maxval=80.0)
    p_len = jax.random.uniform(k2, (N,), minval=2.0, maxval=20.0)
    proposals = jnp.stack([p_start, p_start + p_len], axis=1)          # (N, 2)

    gt_segments = []
    for M, kk in zip(M_list, gks):
        g_start = jax.random.uniform(kk, (M,), minval=0.0, maxval=80.0)
        g_len = jax.random.uniform(jax.random.fold_in(kk, 1), (M,),
                                   minval=2.0, maxval=20.0)
        gt_segments.append(jnp.stack([g_start, g_start + g_len], axis=1))

    # guarantee some positives: first few proposals nearly coincide with sample-0 gts
    proposals = proposals.at[: M_list[0]].set(gt_segments[0] + 0.01)

    pred = jax.random.uniform(k5, (B, N), minval=1e-4, maxval=1.0 - 1e-4)

    loss, gt_ious = scale_invariant_loss(pred, proposals, gt_segments, tile_n=tile_n)
    jax.block_until_ready((loss, gt_ious))

    ref_loss, ref_gt_ious = _reference(pred, proposals, gt_segments, POS_THRESH, ALPHA)
    assert np.allclose(np.asarray(gt_ious), ref_gt_ious, rtol=1e-3, atol=1e-5), \
        f"{name}: gt_ious mismatch"
    assert np.allclose(float(loss), ref_loss, rtol=1e-3, atol=1e-4), \
        f"{name}: loss mismatch: {float(loss)} vs {ref_loss}"


if __name__ == "__main__":
    key = jax.random.PRNGKey(0)
    k_a, k_b = jax.random.split(key)
    # small single-tile case (TN == N)
    _run_case(k_a, B=2, N=128, M_list=[7, 5], name="single-tile")
    # multi-tile + lane-padding case (forced TN=128, N padded 300 -> 384, 3 tiles)
    _run_case(k_b, B=2, N=300, M_list=[6, 9], tile_n=128, name="tiled")
    print("KERNEL_OK")
</pallas_src>

<mosaic_0001>
module attributes {stable_mosaic.version = 11 : i64} {
  func.func @_scale_invariant_loss_kernel(%arg0: i32, %arg1: i32, %arg2: memref<2xi32, #tpu.memory_space<smem>>, %arg3: memref<2x128xf32, #tpu.memory_space<vmem>>, %arg4: memref<1x8x2xf32, #tpu.memory_space<vmem>>, %arg5: memref<1x1x128xf32, #tpu.memory_space<vmem>>, %arg6: memref<1x1x128xf32, #tpu.memory_space<vmem>>, %arg7: memref<1x1x128xf32, #tpu.memory_space<vmem>>, %arg8: memref<8x1xf32, #tpu.memory_space<vmem>>, %arg9: memref<8x1xf32, #tpu.memory_space<vmem>>, %arg10: memref<2xf32, #tpu.memory_space<smem>>) attributes {dimension_semantics = [#tpu.dimension_semantics<parallel>, #tpu.dimension_semantics<arbitrary>], iteration_bounds = array<i64: 2, 1>, scalar_prefetch = 1 : i64, scratch_operands = 3 : i64, tpu.core_type = #tpu.core_type<tc>, window_params = [{transform_indices = @transform_0, window_bounds = array<i64: 2, 128>}, {transform_indices = @transform_1, window_bounds = array<i64: 1, 8, 2>}, {transform_indices = @transform_2, window_bounds = array<i64: 1, 1, 128>}, {transform_indices = @transform_3, window_bounds = array<i64: 1, 1, 128>}, {transform_indices = @transform_4, window_bounds = array<i64: 1, 1, 128>}]} {
    %c0_i32 = arith.constant 0 : i32
    %0 = arith.cmpi eq, %arg1, %c0_i32 : i32
    %1 = arith.extui %0 : i1 to i32
    %c0_i32_0 = arith.constant 0 : i32
    %2 = arith.cmpi ne, %1, %c0_i32_0 : i32
    scf.if %2 {
      %cst_51 = arith.constant 0.000000e+00 : f32
      %125 = vector.broadcast %cst_51 : f32 to vector<8x1xf32>
      %c0_52 = arith.constant 0 : index
      %c0_53 = arith.constant 0 : index
      %126 = vector.load %arg8[%c0_52, %c0_53] : memref<8x1xf32, #tpu.memory_space<vmem>>, vector<8x1xf32>
      tpu.vector_store %arg8[%c0_52, %c0_53], %125 {strides = array<i32>} : memref<8x1xf32, #tpu.memory_space<vmem>>, vector<8x1xf32>,
      %cst_54 = arith.constant 0.000000e+00 : f32
      %127 = vector.broadcast %cst_54 : f32 to vector<8x1xf32>
      %c0_55 = arith.constant 0 : index
      %c0_56 = arith.constant 0 : index
      %128 = vector.load %arg9[%c0_55, %c0_56] : memref<8x1xf32, #tpu.memory_space<vmem>>, vector<8x1xf32>
      tpu.vector_store %arg9[%c0_55, %c0_56], %127 {strides = array<i32>} : memref<8x1xf32, #tpu.memory_space<vmem>>, vector<8x1xf32>,
      %cst_57 = arith.constant 0.000000e+00 : f32
      %c0_58 = arith.constant 0 : index
      %129 = memref.load %arg10[%c0_58] : memref<2xf32, #tpu.memory_space<smem>>
      memref.store %cst_57, %arg10[%c0_58] : memref<2xf32, #tpu.memory_space<smem>>
      %cst_59 = arith.constant 0.000000e+00 : f32
      %c1_60 = arith.constant 1 : index
      %130 = memref.load %arg10[%c1_60] : memref<2xf32, #tpu.memory_space<smem>>
      memref.store %cst_59, %arg10[%c1_60] : memref<2xf32, #tpu.memory_space<smem>>
    } else {
    }
    %c0 = arith.constant 0 : index
    %c0_1 = arith.constant 0 : index
    %3 = vector.load %arg3[%c0, %c0_1] : memref<2x128xf32, #tpu.memory_space<vmem>>, vector<1x128xf32>
    %c1 = arith.constant 1 : index
    %c0_2 = arith.constant 0 : index
    %4 = vector.load %arg3[%c1, %c0_2] : memref<2x128xf32, #tpu.memory_space<vmem>>, vector<1x128xf32>
    %c0_3 = arith.constant 0 : index
    %c0_4 = arith.constant 0 : index
    %c0_5 = arith.constant 0 : index
    %5 = vector.load %arg4[%c0_3, %c0_4, %c0_5] : memref<1x8x2xf32, #tpu.memory_space<vmem>>, vector<1x8x2xf32>
    %6 = vector.shape_cast %5 : vector<1x8x2xf32> to vector<8x2xf32>
    %7 = vector.extract_strided_slice %6 {offsets = [0, 0], sizes = [8, 1], strides = [1, 1]} : vector<8x2xf32> to vector<8x1xf32>
    %8 = vector.extract_strided_slice %6 {offsets = [0, 1], sizes = [8, 1], strides = [1, 1]} : vector<8x2xf32> to vector<8x1xf32>
    %9 = arith.index_cast %arg0 : i32 to index
    %10 = memref.load %arg2[%9] : memref<2xi32, #tpu.memory_space<smem>>
    %11 = tpu.iota {dimensions = array<i32: 0>} : vector<8x1xi32>
    %12 = vector.broadcast %10 : i32 to vector<8x1xi32>
    %13 = arith.cmpi slt, %11, %12 : vector<8x1xi32>
    %14 = vector.broadcast %4 : vector<1x128xf32> to vector<8x128xf32>
    %15 = vector.broadcast %8 : vector<8x1xf32> to vector<8x128xf32>
    %16 = arith.minimumf %14, %15 : vector<8x128xf32>
    %17 = vector.broadcast %3 : vector<1x128xf32> to vector<8x128xf32>
    %18 = vector.broadcast %7 : vector<8x1xf32> to vector<8x128xf32>
    %19 = arith.maximumf %17, %18 : vector<8x128xf32>
    %20 = arith.subf %16, %19 : vector<8x128xf32>
    %cst = arith.constant 0.000000e+00 : f32
    %21 = vector.broadcast %cst : f32 to vector<8x128xf32>
    %22 = arith.maximumf %20, %21 : vector<8x128xf32>
    %23 = arith.subf %4, %3 : vector<1x128xf32>
    %24 = arith.subf %8, %7 : vector<8x1xf32>
    %25 = vector.broadcast %23 : vector<1x128xf32> to vector<8x128xf32>
    %26 = vector.broadcast %24 : vector<8x1xf32> to vector<8x128xf32>
    %27 = arith.addf %25, %26 : vector<8x128xf32>
    %28 = arith.subf %27, %22 : vector<8x128xf32>
    %cst_6 = arith.constant 9.99999993E-9 : f32
    %29 = vector.broadcast %cst_6 : f32 to vector<8x128xf32>
    %30 = arith.maximumf %28, %29 : vector<8x128xf32>
    %cst_7 = arith.constant 0.899999976 : f32
    %31 = vector.broadcast %cst_7 : f32 to vector<8x128xf32>
    %32 = arith.mulf %31, %30 : vector<8x128xf32>
    %33 = arith.cmpf ogt, %22, %32 : vector<8x128xf32>
    %34 = vector.broadcast %13 : vector<8x1xi1> to vector<8x128xi1>
    %35 = arith.andi %33, %34 : vector<8x128xi1>
    %cst_8 = arith.constant 1.000000e+00 : f32
    %cst_9 = arith.constant 0.000000e+00 : f32
    %36 = vector.broadcast %cst_8 : f32 to vector<8x128xf32>
    %37 = vector.broadcast %cst_9 : f32 to vector<8x128xf32>
    %38 = arith.select %35, %36, %37 : vector<8x128xi1>, vector<8x128xf32>
    %cst_10 = arith.constant dense<0xFF800000> : vector<128xf32>
    %39 = vector.multi_reduction <maximumf>, %38, %cst_10 [0] : vector<8x128xf32> to vector<128xf32>
    %40 = vector.shape_cast %39 : vector<128xf32> to vector<1x128xf32>
    %cst_11 = arith.constant 5.000000e-01 : f32
    %41 = vector.broadcast %cst_11 : f32 to vector<1x128xf32>
    %42 = arith.cmpf ogt, %40, %41 : vector<1x128xf32>
    %43 = tpu.reciprocal %30 {approx = true} : vector<8x128xf32> -> vector<8x128xf32>
    %44 = arith.mulf %22, %43 : vector<8x128xf32>
    %cst_12 = arith.constant -1.000000e+00 : f32
    %45 = vector.shape_cast %13 : vector<8x1xi1> to vector<8x1xi1>
    %46 = vector.broadcast %45 : vector<8x1xi1> to vector<8x128xi1>
    %47 = vector.broadcast %cst_12 : f32 to vector<8x128xf32>
    %48 = arith.select %46, %44, %47 : vector<8x128xi1>, vector<8x128xf32>
    %cst_13 = arith.constant dense<0xFF800000> : vector<128xf32>
    %49 = vector.multi_reduction <maximumf>, %48, %cst_13 [0] : vector<8x128xf32> to vector<128xf32>
    %50 = vector.shape_cast %49 : vector<128xf32> to vector<1x128xf32>
    %51 = vector.broadcast %50 : vector<1x128xf32> to vector<8x128xf32>
    %52 = arith.cmpf oge, %48, %51 : vector<8x128xf32>
    %c8_i32 = arith.constant 8 : i32
    %53 = vector.shape_cast %11 : vector<8x1xi32> to vector<8x1xi32>
    %54 = vector.broadcast %53 : vector<8x1xi32> to vector<8x128xi32>
    %55 = vector.broadcast %c8_i32 : i32 to vector<8x128xi32>
    %56 = arith.select %52, %54, %55 : vector<8x128xi1>, vector<8x128xi32>
    %cst_14 = arith.constant dense<2147483647> : vector<128xi32>
    %57 = vector.multi_reduction <minsi>, %56, %cst_14 [0] : vector<8x128xi32> to vector<128xi32>
    %58 = vector.shape_cast %57 : vector<128xi32> to vector<1x128xi32>
    %59 = vector.broadcast %11 : vector<8x1xi32> to vector<8x128xi32>
    %60 = vector.broadcast %58 : vector<1x128xi32> to vector<8x128xi32>
    %61 = arith.cmpi eq, %59, %60 : vector<8x128xi32>
    %cst_15 = arith.constant 0.000000e+00 : f32
    %62 = vector.broadcast %cst_15 : f32 to vector<8x128xf32>
    %63 = arith.select %61, %22, %62 : vector<8x128xi1>, vector<8x128xf32>
    %cst_16 = arith.constant dense<0.000000e+00> : vector<128xf32>
    %64 = vector.multi_reduction <add>, %63, %cst_16 [0] : vector<8x128xf32> to vector<128xf32>
    %65 = vector.shape_cast %64 : vector<128xf32> to vector<1x128xf32>
    %cst_17 = arith.constant 0.000000e+00 : f32
    %66 = vector.broadcast %cst_17 : f32 to vector<8x128xf32>
    %67 = arith.select %61, %30, %66 : vector<8x128xi1>, vector<8x128xf32>
    %cst_18 = arith.constant dense<0.000000e+00> : vector<128xf32>
    %68 = vector.multi_reduction <add>, %67, %cst_18 [0] : vector<8x128xf32> to vector<128xf32>
    %69 = vector.shape_cast %68 : vector<128xf32> to vector<1x128xf32>
    %70 = arith.divf %65, %69 : vector<1x128xf32>
    %c0_19 = arith.constant 0 : index
    %c0_20 = arith.constant 0 : index
    %c0_21 = arith.constant 0 : index
    %71 = vector.load %arg6[%c0_19, %c0_20, %c0_21] : memref<1x1x128xf32, #tpu.memory_space<vmem>>, vector<1x1x128xf32>
    %72 = vector.shape_cast %71 : vector<1x1x128xf32> to vector<1x128xf32>
    %73 = vector.shape_cast %70 : vector<1x128xf32> to vector<1x1x128xf32>
    tpu.vector_store %arg6[%c0_19, %c0_20, %c0_21], %73 {strides = array<i32>} : memref<1x1x128xf32, #tpu.memory_space<vmem>>, vector<1x1x128xf32>,
    %c0_22 = arith.constant 0 : index
    %c0_23 = arith.constant 0 : index
    %c0_24 = arith.constant 0 : index
    %74 = vector.load %arg5[%c0_22, %c0_23, %c0_24] : memref<1x1x128xf32, #tpu.memory_space<vmem>>, vector<1x1x128xf32>
    %75 = vector.shape_cast %74 : vector<1x1x128xf32> to vector<1x128xf32>
    %76 = math.log %75 : vector<1x128xf32>
    %cst_25 = arith.constant -1.000000e+02 : f32
    %77 = vector.broadcast %cst_25 : f32 to vector<1x128xf32>
    %78 = arith.maximumf %76, %77 : vector<1x128xf32>
    %cst_26 = arith.constant 1.000000e+00 : f32
    %79 = vector.broadcast %cst_26 : f32 to vector<1x128xf32>
    %80 = arith.subf %79, %75 : vector<1x128xf32>
    %81 = math.log %80 : vector<1x128xf32>
    %cst_27 = arith.constant -1.000000e+02 : f32
    %82 = vector.broadcast %cst_27 : f32 to vector<1x128xf32>
    %83 = arith.maximumf %81, %82 : vector<1x128xf32>
    %cst_28 = arith.constant 0.000000e+00 : f32
    %84 = vector.broadcast %cst_28 : f32 to vector<1x128xf32>
    %85 = arith.subf %84, %78 : vector<1x128xf32>
    %cst_29 = arith.constant 0.000000e+00 : f32
    %86 = vector.broadcast %cst_29 : f32 to vector<1x128xf32>
    %87 = arith.subf %86, %83 : vector<1x128xf32>
    %88 = arith.select %42, %85, %87 : vector<1x128xi1>, vector<1x128xf32>
    %c0_30 = arith.constant 0 : index
    %c0_31 = arith.constant 0 : index
    %89 = vector.load %arg8[%c0_30, %c0_31] : memref<8x1xf32, #tpu.memory_space<vmem>>, vector<8x1xf32>
    %cst_32 = arith.constant dense<0.000000e+00> : vector<8xf32>
    %90 = vector.multi_reduction <add>, %38, %cst_32 [1] : vector<8x128xf32> to vector<8xf32>
    %91 = vector.shape_cast %90 : vector<8xf32> to vector<8x1xf32>
    %92 = arith.addf %89, %91 : vector<8x1xf32>
    %c0_33 = arith.constant 0 : index
    %c0_34 = arith.constant 0 : index
    %93 = vector.load %arg8[%c0_33, %c0_34] : memref<8x1xf32, #tpu.memory_space<vmem>>, vector<8x1xf32>
    tpu.vector_store %arg8[%c0_33, %c0_34], %92 {strides = array<i32>} : memref<8x1xf32, #tpu.memory_space<vmem>>, vector<8x1xf32>,
    %94 = vector.broadcast %42 : vector<1x128xi1> to vector<8x128xi1>
    %95 = arith.andi %61, %94 : vector<8x128xi1>
    %cst_35 = arith.constant 0.000000e+00 : f32
    %96 = vector.shape_cast %88 : vector<1x128xf32> to vector<1x128xf32>
    %97 = vector.broadcast %96 : vector<1x128xf32> to vector<8x128xf32>
    %98 = vector.broadcast %cst_35 : f32 to vector<8x128xf32>
    %99 = arith.select %95, %97, %98 : vector<8x128xi1>, vector<8x128xf32>
    %c0_36 = arith.constant 0 : index
    %c0_37 = arith.constant 0 : index
    %100 = vector.load %arg9[%c0_36, %c0_37] : memref<8x1xf32, #tpu.memory_space<vmem>>, vector<8x1xf32>
    %cst_38 = arith.constant dense<0.000000e+00> : vector<8xf32>
    %101 = vector.multi_reduction <add>, %99, %cst_38 [1] : vector<8x128xf32> to vector<8xf32>
    %102 = vector.shape_cast %101 : vector<8xf32> to vector<8x1xf32>
    %103 = arith.addf %100, %102 : vector<8x1xf32>
    %c0_39 = arith.constant 0 : index
    %c0_40 = arith.constant 0 : index
    %104 = vector.load %arg9[%c0_39, %c0_40] : memref<8x1xf32, #tpu.memory_space<vmem>>, vector<8x1xf32>
    tpu.vector_store %arg9[%c0_39, %c0_40], %103 {strides = array<i32>} : memref<8x1xf32, #tpu.memory_space<vmem>>, vector<8x1xf32>,
    %c0_41 = arith.constant 0 : index
    %105 = memref.load %arg10[%c0_41] : memref<2xf32, #tpu.memory_space<smem>>
    %cst_42 = arith.constant 1.000000e+00 : f32
    %cst_43 = arith.constant 0.000000e+00 : f32
    %106 = vector.broadcast %cst_42 : f32 to vector<1x128xf32>
    %107 = vector.broadcast %cst_43 : f32 to vector<1x128xf32>
    %108 = arith.select %42, %106, %107 : vector<1x128xi1>, vector<1x128xf32>
    %109 = vector.shape_cast %108 : vector<1x128xf32> to vector<1x1x128xf32>
    %cst_44 = arith.constant dense<0.000000e+00> : vector<1xf32>
    %110 = vector.multi_reduction <add>, %109, %cst_44 [1, 2] : vector<1x1x128xf32> to vector<1xf32>
    %111 = vector.shape_cast %110 : vector<1xf32> to vector<1x1x1xf32>
    %112 = vector.extract %111[0, 0, 0] : f32 from vector<1x1x1xf32>
    %113 = arith.addf %105, %112 : f32
    %c0_45 = arith.constant 0 : index
    %114 = memref.load %arg10[%c0_45] : memref<2xf32, #tpu.memory_space<smem>>
    memref.store %113, %arg10[%c0_45] : memref<2xf32, #tpu.memory_space<smem>>
    %c1_46 = arith.constant 1 : index
    %115 = memref.load %arg10[%c1_46] : memref<2xf32, #tpu.memory_space<smem>>
    %116 = vector.shape_cast %88 : vector<1x128xf32> to vector<1x1x128xf32>
    %cst_47 = arith.constant dense<0.000000e+00> : vector<1xf32>
    %117 = vector.multi_reduction <add>, %116, %cst_47 [1, 2] : vector<1x1x128xf32> to vector<1xf32>
    %118 = vector.shape_cast %117 : vector<1xf32> to vector<1x1x1xf32>
    %119 = vector.extract %118[0, 0, 0] : f32 from vector<1x1x1xf32>
    %120 = arith.addf %115, %119 : f32
    %c1_48 = arith.constant 1 : index
    %121 = memref.load %arg10[%c1_48] : memref<2xf32, #tpu.memory_space<smem>>
    memref.store %120, %arg10[%c1_48] : memref<2xf32, #tpu.memory_space<smem>>
    %c0_i32_49 = arith.constant 0 : i32
    %122 = arith.cmpi eq, %arg1, %c0_i32_49 : i32
    %123 = arith.extui %122 : i1 to i32
    %c0_i32_50 = arith.constant 0 : i32
    %124 = arith.cmpi ne, %123, %c0_i32_50 : i32
    scf.if %124 {
      %c0_51 = arith.constant 0 : index
      %c0_52 = arith.constant 0 : index
      %125 = vector.load %arg8[%c0_51, %c0_52] : memref<8x1xf32, #tpu.memory_space<vmem>>, vector<8x1xf32>
      %c0_53 = arith.constant 0 : index
      %c0_54 = arith.constant 0 : index
      %126 = vector.load %arg9[%c0_53, %c0_54] : memref<8x1xf32, #tpu.memory_space<vmem>>, vector<8x1xf32>
      %127 = vector.shape_cast %126 : vector<8x1xf32> to vector<1x8x1xf32>
      %cst_55 = arith.constant dense<0.000000e+00> : vector<1xf32>
      %128 = vector.multi_reduction <add>, %127, %cst_55 [1, 2] : vector<1x8x1xf32> to vector<1xf32>
      %129 = vector.shape_cast %128 : vector<1xf32> to vector<1x1x1xf32>
      %130 = vector.extract %129[0, 0, 0] : f32 from vector<1x1x1xf32>
      %cst_56 = arith.constant 1.000000e+00 : f32
      %131 = vector.broadcast %cst_56 : f32 to vector<8x1xf32>
      %132 = arith.maximumf %125, %131 : vector<8x1xf32>
      %133 = arith.divf %126, %132 : vector<8x1xf32>
      %134 = vector.shape_cast %133 : vector<8x1xf32> to vector<1x8x1xf32>
      %cst_57 = arith.constant dense<0.000000e+00> : vector<1xf32>
      %135 = vector.multi_reduction <add>, %134, %cst_57 [1, 2] : vector<1x8x1xf32> to vector<1xf32>
      %136 = vector.shape_cast %135 : vector<1xf32> to vector<1x1x1xf32>
      %137 = vector.extract %136[0, 0, 0] : f32 from vector<1x1x1xf32>
      %c0_58 = arith.constant 0 : index
      %138 = memref.load %arg10[%c0_58] : memref<2xf32, #tpu.memory_space<smem>>
      %c1_59 = arith.constant 1 : index
      %139 = memref.load %arg10[%c1_59] : memref<2xf32, #tpu.memory_space<smem>>
      %140 = arith.subf %139, %130 : f32
      %141 = tpu.iota {dimensions = array<i32: 1>} : vector<1x128xi32>
      %c0_i32_60 = arith.constant 0 : i32
      %142 = vector.broadcast %c0_i32_60 : i32 to vector<1x128xi32>
      %143 = arith.cmpi eq, %141, %142 : vector<1x128xi32>
      %cst_61 = arith.constant 0.000000e+00 : f32
      %144 = vector.broadcast %138 : f32 to vector<1x128xf32>
      %145 = vector.broadcast %cst_61 : f32 to vector<1x128xf32>
      %146 = arith.select %143, %144, %145 : vector<1x128xi1>, vector<1x128xf32>
      %c1_i32 = arith.constant 1 : i32
      %147 = vector.broadcast %c1_i32 : i32 to vector<1x128xi32>
      %148 = arith.cmpi eq, %141, %147 : vector<1x128xi32>
      %cst_62 = arith.constant 0.000000e+00 : f32
      %149 = vector.broadcast %139 : f32 to vector<1x128xf32>
      %150 = vector.broadcast %cst_62 : f32 to vector<1x128xf32>
      %151 = arith.select %148, %149, %150 : vector<1x128xi1>, vector<1x128xf32>
      %152 = arith.addf %146, %151 : vector<1x128xf32>
      %c2_i32 = arith.constant 2 : i32
      %153 = vector.broadcast %c2_i32 : i32 to vector<1x128xi32>
      %154 = arith.cmpi eq, %141, %153 : vector<1x128xi32>
      %cst_63 = arith.constant 0.000000e+00 : f32
      %155 = vector.broadcast %137 : f32 to vector<1x128xf32>
      %156 = vector.broadcast %cst_63 : f32 to vector<1x128xf32>
      %157 = arith.select %154, %155, %156 : vector<1x128xi1>, vector<1x128xf32>
      %158 = arith.addf %152, %157 : vector<1x128xf32>
      %c3_i32 = arith.constant 3 : i32
      %159 = vector.broadcast %c3_i32 : i32 to vector<1x128xi32>
      %160 = arith.cmpi eq, %141, %159 : vector<1x128xi32>
      %cst_64 = arith.constant 0.000000e+00 : f32
      %161 = vector.broadcast %140 : f32 to vector<1x128xf32>
      %162 = vector.broadcast %cst_64 : f32 to vector<1x128xf32>
      %163 = arith.select %160, %161, %162 : vector<1x128xi1>, vector<1x128xf32>
      %164 = arith.addf %158, %163 : vector<1x128xf32>
      %c0_65 = arith.constant 0 : index
      %c0_66 = arith.constant 0 : index
      %c0_67 = arith.constant 0 : index
      %165 = vector.load %arg7[%c0_65, %c0_66, %c0_67] : memref<1x1x128xf32, #tpu.memory_space<vmem>>, vector<1x1x128xf32>
      %166 = vector.shape_cast %165 : vector<1x1x128xf32> to vector<1x128xf32>
      %167 = vector.shape_cast %164 : vector<1x128xf32> to vector<1x1x128xf32>
      tpu.vector_store %arg7[%c0_65, %c0_66, %c0_67], %167 {strides = array<i32>} : memref<1x1x128xf32, #tpu.memory_space<vmem>>, vector<1x1x128xf32>,
    } else {
    }
    return
  }
  func.func @transform_0(%arg0: i32, %arg1: i32, %arg2: memref<2xi32, #tpu.memory_space<smem>>) -> (i32, i32) {
    %c0_i32 = arith.constant 0 : i32
    %c0_i32_0 = arith.constant 0 : i32
    return %c0_i32, %arg1 : i32, i32
  }
  func.func @transform_1(%arg0: i32, %arg1: i32, %arg2: memref<2xi32, #tpu.memory_space<smem>>) -> (i32, i32, i32) {
    %c0_i32 = arith.constant 0 : i32
    %c0_i32_0 = arith.constant 0 : i32
    %c0_i32_1 = arith.constant 0 : i32
    return %arg0, %c0_i32, %c0_i32_0 : i32, i32, i32
  }
  func.func @transform_2(%arg0: i32, %arg1: i32, %arg2: memref<2xi32, #tpu.memory_space<smem>>) -> (i32, i32, i32) {
    %c0_i32 = arith.constant 0 : i32
    %c0_i32_0 = arith.constant 0 : i32
    return %arg0, %c0_i32, %arg1 : i32, i32, i32
  }
  func.func @transform_3(%arg0: i32, %arg1: i32, %arg2: memref<2xi32, #tpu.memory_space<smem>>) -> (i32, i32, i32) {
    %c0_i32 = arith.constant 0 : i32
    %c0_i32_0 = arith.constant 0 : i32
    return %arg0, %c0_i32, %arg1 : i32, i32, i32
  }
  func.func @transform_4(%arg0: i32, %arg1: i32, %arg2: memref<2xi32, #tpu.memory_space<smem>>) -> (i32, i32, i32) {
    %c0_i32 = arith.constant 0 : i32
    %c0_i32_0 = arith.constant 0 : i32
    %c0_i32_1 = arith.constant 0 : i32
    return %arg0, %c0_i32, %c0_i32_0 : i32, i32, i32
  }
}

</mosaic_0001>

<llo_original>
// kernel: tpu_custom_call.1
$region0: #{tpu_custom_call.1}
  #allocation0 [shape = 'u32[]', space=smem, size = 0x4, offset = 0x4, fixed_abs, tag = 'smem constant byte address 0x4 - core index']
  #allocation1 [shape = 'u32[144,128]{1,0:T(1,128)}', space=vmem, size = 0x12000, scoped, tag = 'internal scratch']
  #allocation2 [shape = 'f32[8,1]{1,0:T(8,128)}', space=vmem, size = 0x1000, scoped, tag = 'scratch operand']
  #allocation3 [shape = 'f32[8,1]{1,0:T(8,128)}', space=vmem, size = 0x1000, scoped, tag = 'scratch operand']
  #allocation4 [shape = 'f32[2]{0:T(128)}', space=smem, size = 0x200, scoped, tag = 'scratch operand']
  #allocation5 [shape = 's32[1]{0}', space=sflag, size = 0x4, scoped, tag = 'scoped memory for tpu_custom_call.1']
  #allocation6 [shape = 'u8[512]{0}', space=smem, size = 0x200, scoped, tag = 'prefetched SMEM operand 0']
  %s0 = inlined_call_operand.vmem [shape: s32[2], index: 0, kind: input, shape index: {}]
  %s1 = inlined_call_operand.vmem [shape: f32[2,128], index: 1, kind: input, shape index: {}]
  %s2 = inlined_call_operand.vmem [shape: f32[2,8,2], index: 2, kind: input, shape index: {}]
  %s3 = inlined_call_operand.vmem [shape: f32[2,1,128], index: 3, kind: input, shape index: {}]
  %s4 = inlined_call_operand.hbm [shape: f32[2,1,128], index: 4, kind: output, shape index: {0}]
  %s5 = inlined_call_operand.hbm [shape: f32[2,1,128], index: 5, kind: output, shape index: {1}]
  %6 = xla_tuple %s4, %s5
  %s7 = sld [smem:[#allocation0]]
  $region61: #{tpu_custom_call.1} parent=0
    _
  %s9 = ssub.s32 1, %s7
  %s10 = scalar_select 0, %s9, %s7
  %s11 = sshll.u32 %s0, 4
  %s12 = int_to_ptr.vmem [resolvable:$true] %s11
  %14 = dma.vmem_to_smem %s12, 16, [#allocation6], [#allocation5]
  %15 = dma.done [#allocation5], 16
  %16 = sfence
  $region1: #{tpu_custom_call.1} parent=0
    #allocation7 [shape = 'u8[1024]{0}', space=vmem, size = 0x400, scoped, tag = 'output window, operand 0']
    #allocation8 [shape = 's32[2]{0}', space=sflag, size = 0x8, scoped, tag = 'scoped memory for tpu_custom_call.1']
    #allocation9 [shape = 'u8[1024]{0}', space=vmem, size = 0x400, scoped, tag = 'output window, operand 1']
    #allocation10 [shape = 's32[2]{0}', space=sflag, size = 0x8, scoped, tag = 'scoped memory for tpu_custom_call.1']
    %17 = vsyncpa [#allocation8], 0
    %s18 = scalar_lea.sflag [#allocation8], 1
    %19 = vsyncpa %s18, 0
    %20 = vsyncpa [#allocation10], 0
    %s21 = scalar_lea.sflag [#allocation10], 1
    %22 = vsyncpa %s21, 0
    loop: start=0, step=1, limit=4
    $region2: #{tpu_custom_call.1} parent=1 // loop_pre_header
      _
    $region3: #{tpu_custom_call.1} parent=1 // loop_header
      %s24 = sphi 0, %s28
      %p25 = scmp.ge.s32.totalorder %s24, 4
      %s31 = sphi 0, %s43
      %s32 = sphi 0, %s39
      %s33 = sphi 0, %s31
      %s34 = sphi 0, %s32
      %s35 = sphi 0, %s33
      %s36 = sphi 0, %s34
      %s46 = sphi 0, %s48
      %s49 = sphi 0, %s46
      %s50 = sphi 0, %s49
      %s66 = sphi 0, %s50
      %s72 = sphi 0, %s74
      %s75 = sphi 0, %s72
      %s76 = sphi 0, %s75
      %s92 = sphi 0, %s76
      %s100 = sphi 0, %s102
      %s103 = sphi 0, %s100
      %s104 = sphi 0, %s103
      %s120 = sphi 0, %s104
      %s128 = sphi 0, %s130
      %s131 = sphi 0, %s128
      %s132 = sphi 0, %s131
      %s148 = sphi 0, %s132
      %s154 = sphi 0, %s156
      %s157 = sphi 0, %s154
      %s158 = sphi 0, %s157
      %s174 = sphi 0, %s158
    $region4: #{tpu_custom_call.1} parent=1 // loop_header_branch
      %27 = sbr.rel (%p25) target = $region8
    $region5: #{tpu_custom_call.1} parent=1 // loop_body
      %s29 = ssub.s32 %s24, 1
      %s30 = ssub.s32 %s24, 2
      %s37 = sadd.s32 1, %s32
      %p38 = scmp.ge.s32.totalorder %s37, 1
      %s39 = scalar_select %p38, 0, %s37
      %s40 = sadd.s32 1, %s31
      %s41 = scalar_select %p38, %s40, %s31
      %p42 = scmp.ge.s32.totalorder %s41, 2
      %s43 = scalar_select %p42, 0, %s41
      %s44 = ssub.s32 %s32, %s39
      %p45 = scmp.eq.s32.totalorder %s44, 0
      %s47 = sadd.s32 %s46, 1
      %s48 = scalar_select %p45, %s46, %s47
      %p51 = pneg %p45
      %p52 = scmp.eq.s32.totalorder %s24, 1
      %p53 = por %p51, %p52
      %p54 = scmp.ne.s32.totalorder %s46, %s49
      %p55 = scmp.eq.s32.totalorder %s24, 0
      %p56 = por %p54, %p55
      %p57 = scmp.ne.s32.totalorder %s46, %s49
      %p58 = scmp.eq.s32.totalorder %s29, 1
      %p59 = por %p57, %p58
      %p60 = scmp.ne.s32.totalorder %s49, %s50
      %p61 = scmp.eq.s32.totalorder %s29, 0
      %p62 = por %p60, %p61
      %p63 = scmp.ne.s32.totalorder %s49, %s50
      %p64 = scmp.eq.s32.totalorder %s30, 1
      %p65 = por %p63, %p64
      %p67 = scmp.ne.s32.totalorder %s50, %s66
      %p68 = scmp.eq.s32.totalorder %s30, 0
      %p69 = por %p67, %p68
      %s70 = ssub.s32 %s31, %s43
      %p71 = scmp.eq.s32.totalorder %s70, 0
      %s73 = sadd.s32 %s72, 1
      %s74 = scalar_select %p71, %s72, %s73
      %p77 = pneg %p71
      %p78 = scmp.eq.s32.totalorder %s24, 1
      %p79 = por %p77, %p78
      %p80 = scmp.ne.s32.totalorder %s72, %s75
      %p81 = scmp.eq.s32.totalorder %s24, 0
      %p82 = por %p80, %p81
      %p83 = scmp.ne.s32.totalorder %s72, %s75
      %p84 = scmp.eq.s32.totalorder %s29, 1
      %p85 = por %p83, %p84
      %p86 = scmp.ne.s32.totalorder %s75, %s76
      %p87 = scmp.eq.s32.totalorder %s29, 0
      %p88 = por %p86, %p87
      %p89 = scmp.ne.s32.totalorder %s75, %s76
      %p90 = scmp.eq.s32.totalorder %s30, 1
      %p91 = por %p89, %p90
      %p93 = scmp.ne.s32.totalorder %s76, %s92
      %p94 = scmp.eq.s32.totalorder %s30, 0
      %p95 = por %p93, %p94
      %s96 = ssub.s32 %s31, %s43
      %s97 = ssub.s32 %s32, %s39
      %s98 = sor.u32 %s96, %s97
      %p99 = scmp.eq.s32.totalorder %s98, 0
      %s101 = sadd.s32 %s100, 1
      %s102 = scalar_select %p99, %s100, %s101
      %p105 = pneg %p99
      %p106 = scmp.eq.s32.totalorder %s24, 1
      %p107 = por %p105, %p106
      %p108 = scmp.ne.s32.totalorder %s100, %s103
      %p109 = scmp.eq.s32.totalorder %s24, 0
      %p110 = por %p108, %p109
      %p111 = scmp.ne.s32.totalorder %s100, %s103
      %p112 = scmp.eq.s32.totalorder %s29, 1
      %p113 = por %p111, %p112
      %p114 = scmp.ne.s32.totalorder %s103, %s104
      %p115 = scmp.eq.s32.totalorder %s29, 0
      %p116 = por %p114, %p115
      %p117 = scmp.ne.s32.totalorder %s103, %s104
      %p118 = scmp.eq.s32.totalorder %s30, 1
      %p119 = por %p117, %p118
      %p121 = scmp.ne.s32.totalorder %s104, %s120
      %p122 = scmp.eq.s32.totalorder %s30, 0
      %p123 = por %p121, %p122
      %s124 = ssub.s32 %s31, %s43
      %s125 = ssub.s32 %s32, %s39
      %s126 = sor.u32 %s124, %s125
      %p127 = scmp.eq.s32.totalorder %s126, 0
      %s129 = sadd.s32 %s128, 1
      %s130 = scalar_select %p127, %s128, %s129
      %p133 = pneg %p127
      %p134 = scmp.eq.s32.totalorder %s24, 1
      %p135 = por %p133, %p134
      %p136 = scmp.ne.s32.totalorder %s128, %s131
      %p137 = scmp.eq.s32.totalorder %s24, 0
      %p138 = por %p136, %p137
      %p139 = scmp.ne.s32.totalorder %s128, %s131
      %p140 = scmp.eq.s32.totalorder %s29, 1
      %p141 = por %p139, %p140
      %p142 = scmp.ne.s32.totalorder %s131, %s132
      %p143 = scmp.eq.s32.totalorder %s29, 0
      %p144 = por %p142, %p143
      %p145 = scmp.ne.s32.totalorder %s131, %s132
      %p146 = scmp.eq.s32.totalorder %s30, 1
      %p147 = por %p145, %p146
      %p149 = scmp.ne.s32.totalorder %s132, %s148
      %p150 = scmp.eq.s32.totalorder %s30, 0
      %p151 = por %p149, %p150
      %s152 = ssub.s32 %s31, %s43
      %p153 = scmp.eq.s32.totalorder %s152, 0
      %s155 = sadd.s32 %s154, 1
      %s156 = scalar_select %p153, %s154, %s155
      %p159 = pneg %p153
      %p160 = scmp.eq.s32.totalorder %s24, 1
      %p161 = por %p159, %p160
      %p162 = scmp.ne.s32.totalorder %s154, %s157
      %p163 = scmp.eq.s32.totalorder %s24, 0
      %p164 = por %p162, %p163
      %p165 = scmp.ne.s32.totalorder %s154, %s157
      %p166 = scmp.eq.s32.totalorder %s29, 1
      %p167 = por %p165, %p166
      %p168 = scmp.ne.s32.totalorder %s157, %s158
      %p169 = scmp.eq.s32.totalorder %s29, 0
      %p170 = por %p168, %p169
      %p171 = scmp.ne.s32.totalorder %s157, %s158
      %p172 = scmp.eq.s32.totalorder %s30, 1
      %p173 = por %p171, %p172
      %p175 = scmp.ne.s32.totalorder %s158, %s174
      %p176 = scmp.eq.s32.totalorder %s30, 0
      %p177 = por %p175, %p176
      %p178 = scmp.le.s32.totalorder 1, %s24
      %p179 = scmp.lt.s32.totalorder %s24, 3
      %p180 = pnand %p178, %p179
      %p181 = pneg %p180
      // Predicated region
      $region9: #{tpu_custom_call.1} parent=5 // pred_check
        _
      $region10: #{tpu_custom_call.1} parent=5 // pred_check_branch
        %183 = sbr.rel (%p180) target = $region12
      $region11: #{tpu_custom_call.1} parent=5 // pred_region
        %s184 = ssub.s32 %s24, 1
        // Predicated region
        $region13: #{tpu_custom_call.1} parent=11 // pred_check
          %p185 = pneg %p62
        $region14: #{tpu_custom_call.1} parent=11 // pred_check_branch
          %187 = sbr.rel (%p185) target = $region16
        $region15: #{tpu_custom_call.1} parent=11 // pred_region
          %p188 = scmp.lt.s32.totalorder %s34, 0
          %s189 = scalar_select %p188, %s34, 0
          %s190 = smul.addr %s189, 2
          %s191 = scalar_lea.vmem %s1, %s190
        $region16: #{tpu_custom_call.1} parent=11 // pred_fallthru
          _
      $region12: #{tpu_custom_call.1} parent=5 // pred_fallthru
        _
      %p192 = scmp.lt.s32.totalorder %s24, 2
      // Predicated region
      $region17: #{tpu_custom_call.1} parent=5 // pred_check
        %p193 = pneg %p192
      $region18: #{tpu_custom_call.1} parent=5 // pred_check_branch
        %195 = sbr.rel (%p193) target = $region20
      $region19: #{tpu_custom_call.1} parent=5 // pred_region
        // Predicated region
        $region21: #{tpu_custom_call.1} parent=19 // pred_check
          %p196 = pneg %p82
        $region22: #{tpu_custom_call.1} parent=19 // pred_check_branch
          %198 = sbr.rel (%p196) target = $region24
        $region23: #{tpu_custom_call.1} parent=19 // pred_region
          %p199 = scmp.lt.s32.totalorder %s31, 1
          %s200 = scalar_select %p199, %s31, 1
          %s201 = smul.addr %s200, 8
          %s202 = scalar_lea.vmem %s2, %s201
        $region24: #{tpu_custom_call.1} parent=19 // pred_fallthru
          _
        // Predicated region
        $region25: #{tpu_custom_call.1} parent=19 // pred_check
          %p203 = pneg %p110
        $region26: #{tpu_custom_call.1} parent=19 // pred_check_branch
          %205 = sbr.rel (%p203) target = $region28
        $region27: #{tpu_custom_call.1} parent=19 // pred_region
          %p206 = scmp.lt.s32.totalorder %s31, 1
          %s207 = scalar_select %p206, %s31, 1
          %p208 = scmp.lt.s32.totalorder %s32, 0
          %s209 = scalar_select %p208, %s32, 0
          %s210 = sadd.s32 %s209, %s207
          %s211 = scalar_lea.vmem %s3, %s210
        $region28: #{tpu_custom_call.1} parent=19 // pred_fallthru
          _
      $region20: #{tpu_custom_call.1} parent=5 // pred_fallthru
        _
      %p212 = scmp.le.s32.totalorder 1, %s24
      %p213 = scmp.lt.s32.totalorder %s24, 3
      %p214 = pnand %p212, %p213
      %p215 = pneg %p214
      // Predicated region
      $region29: #{tpu_custom_call.1} parent=5 // pred_check
        _
      $region30: #{tpu_custom_call.1} parent=5 // pred_check_branch
        %217 = sbr.rel (%p214) target = $region32
      $region31: #{tpu_custom_call.1} parent=5 // pred_region
        %s218 = ssub.s32 %s24, 1
        %p219 = scmp.lt.s32.totalorder %s34, 0
        %s220 = scalar_select %p219, %s34, 0
        %s221 = smul.addr %s220, 2
        %s222 = scalar_lea.vmem %s1, %s221
        %p223 = pneg %p62
        %p224 = pneg %p59
        %p225 = scmp.lt.s32.totalorder %s33, 1
        %s226 = scalar_select %p225, %s33, 1
        %s227 = smul.addr %s226, 8
        %s228 = scalar_lea.vmem %s2, %s227
        %p229 = pneg %p88
        %p230 = pneg %p85
        %p231 = scmp.lt.s32.totalorder %s33, 1
        %s232 = scalar_select %p231, %s33, 1
        %p233 = scmp.lt.s32.totalorder %s34, 0
        %s234 = scalar_select %p233, %s34, 0
        %s235 = sadd.s32 %s234, %s232
        %s236 = scalar_lea.vmem %s3, %s235
        %p237 = pneg %p116
        %p238 = pneg %p113
        %p239 = pneg %p144
        %p240 = pneg %p141
        %s241 = sand.u32 %s131, 1
        %s242 = scalar_lea.sflag [#allocation8], %s241
        %s243 = sand.u32 %s131, 1
        %s244 = scalar_lea.vmem [#allocation7], %s243
        %p245 = pneg %p170
        %p246 = pneg %p167
        %s247 = sand.u32 %s157, 1
        %s248 = scalar_lea.sflag [#allocation10], %s247
        %s249 = sand.u32 %s157, 1
        %s250 = scalar_lea.vmem [#allocation9], %s249
        %p251 = scmp.lt.s32.totalorder %s34, 0
        %s252 = scalar_select %p251, %s34, 0
        %s253 = smul.addr %s252, 2
        %s254 = scalar_lea.vmem %s1, %s253
        %p255 = scmp.lt.s32.totalorder %s33, 1
        %s256 = scalar_select %p255, %s33, 1
        %s257 = smul.addr %s256, 8
        %s258 = scalar_lea.vmem %s2, %s257
        %p259 = scmp.lt.s32.totalorder %s33, 1
        %s260 = scalar_select %p259, %s33, 1
        %p261 = scmp.lt.s32.totalorder %s34, 0
        %s262 = scalar_select %p261, %s34, 0
        %s263 = sadd.s32 %s262, %s260
        %s264 = scalar_lea.vmem %s3, %s263
        %p265 = scmp.eq.s32.totalorder %s34, 0
        // Predicated region
        $region33: #{tpu_custom_call.1} parent=31 // pred_check
          %p266 = pneg %p265
        $region34: #{tpu_custom_call.1} parent=31 // pred_check_branch
          %268 = sbr.rel (%p266) target = $region36
        $region35: #{tpu_custom_call.1} parent=31 // pred_region
          %vm269 = vcmask 7168
          %270 = vst.msk [vmem:[#allocation2] sm:$0xff] %vm269, 0.0
          %271 = vst.msk [vmem:[#allocation3] sm:$0xff] %vm269, 0.0
          %s272 = scalar_lea.smem [#allocation4], 0
          %273 = sst [smem:[%s272]] 0.0
          %s274 = scalar_lea.smem [#allocation4], 1
          %275 = sst [smem:[%s274]] 0.0
        $region36: #{tpu_custom_call.1} parent=31 // pred_fallthru
          _
        %v276 = vld [vmem:[%s254] sm:$0x1]
        %v277 = vld [vmem:[%s254 + $0x1] sm:$0x1]
        %v278 = vld [vmem:[%s258] sm:$0xff]
        %s279 = sld [smem:[#allocation6 + %s33]]
        %v280 = vlaneseq
        %v281 = vshrl.u32 %v280, 7
        %v282 = vstv %s279
        %vm283 = vcmp.lt.s32.totalorder %v281, %v282
        %v284 = vlaneseq
        %v285 = vshrl.u32 %v284, 7
        %v286 = vsub.s32 0, %v285
        %v287 = vrot.slane %v277, %v286
        %289 = vset.pattern.permute.xlu0 1
        %290 = vperm.xlu0 %289, %v278
        %v291 = vpop.permute.xlu0 %290
        %v293 = vmin.f32 %v287, %v291
        %v294 = vlaneseq
        %v295 = vshrl.u32 %v294, 7
        %v296 = vsub.s32 0, %v295
        %v297 = vrot.slane %v276, %v296
        %298 = vset.pattern.permute.xlu0 0
        %299 = vperm.xlu0 %298, %v278
        %v300 = vpop.permute.xlu0 %299
        %v302 = vmax.f32 %v297, %v300
        %v303 = vsub.f32 %v293, %v302
        %v304 = vmax.f32 %v303, 0.0
        %v305 = vsub.f32 %v277, %v276
        %306 = vrot.lane.b32.xlu0 %v278, 1
        %v307 = vpop.permute.xlu0 %306
        %v309 = vsub.f32 %v278, %v307
        %v310 = vlaneseq
        %v311 = vshrl.u32 %v310, 7
        %v312 = vsub.s32 0, %v311
        %v313 = vrot.slane %v305, %v312
        %315 = vset.pattern.permute.xlu0 1
        %316 = vperm.xlu0 %315, %v309
        %v317 = vpop.permute.xlu0 %316
        %v319 = vadd.f32 %v313, %v317
        %v320 = vsub.f32 %v319, %v304
        %v321 = vmax.f32 %v320, 1e-08
        %v322 = vmul.f32 %v321, 0.9
        %vm323 = vcmp.gt.f32.partialorder %v304, %v322
        %v324 = vsel %vm283, 1, 0
        %vm325 = vcmp.eq.s32.totalorder %v324, 1
        %vm326 = vmand %vm323, %vm325
        %v327 = vsel %vm326, 1.0, 0.0
        %v328 = vrot.slane %v327, 4
        %v329 = vmax.f32 %v327, %v328
        %v330 = vrot.slane %v329, 2
        %v331 = vmax.f32 %v329, %v330
        %v332 = vrot.slane %v331, 1
        %v333 = vmax.f32 %v331, %v332
        %vm334 = vcmp.gt.f32.partialorder %v333, 0.5
        %v335 = vrcp.pop %v321
        %v336 = vmul.f32 %v304, %v335
        %v337 = vsel %vm325, %v336, -1.0
        %v338 = vrot.slane %v337, 4
        %v339 = vmax.f32 %v337, %v338
        %v340 = vrot.slane %v339, 2
        %v341 = vmax.f32 %v339, %v340
        %v342 = vrot.slane %v341, 1
        %v343 = vmax.f32 %v341, %v342
        %vm344 = vcmp.ge.f32.partialorder %v337, %v343
        %v345 = vsel %vm344, %v281, 8
        %v346 = vrot.slane %v345, 4
        %vm347 = vcmp.lt.s32.totalorder %v345, %v346
        %v348 = vsel %vm347, %v345, %v346
        %v349 = vrot.slane %v348, 2
        %vm350 = vcmp.lt.s32.totalorder %v348, %v349
        %v351 = vsel %vm350, %v348, %v349
        %v352 = vrot.slane %v351, 1
        %vm353 = vcmp.lt.s32.totalorder %v351, %v352
        %v354 = vsel %vm353, %v351, %v352
        %vm355 = vcmp.eq.s32.totalorder %v281, %v354
        %v356 = vsel %vm355, %v304, 0.0
        %v357 = vrot.slane %v356, 4
        %v358 = vadd.f32 %v356, %v357
        %v359 = vrot.slane %v358, 2
        %v360 = vadd.f32 %v358, %v359
        %v361 = vrot.slane %v360, 1
        %v362 = vadd.f32 %v360, %v361
        %v363 = vsel %vm355, %v321, 0.0
        %v364 = vrot.slane %v363, 4
        %v365 = vadd.f32 %v363, %v364
        %v366 = vrot.slane %v365, 2
        %v367 = vadd.f32 %v365, %v366
        %v368 = vrot.slane %v367, 1
        %v369 = vadd.f32 %v367, %v368
        %v370 = vrcp.pop %v369
        %v371 = vmul.f32 %v362, %v370
        %372 = vst [vmem:[%s244] sm:$0x1] %v371
        %v373 = vld [vmem:[%s264] sm:$0x1]
        %v374 = vlog2.pop %v373
        %v375 = vmul.f32 %v374, 0.6931472
        %v376 = vmax.f32 %v375, -100.0
        %v377 = vsub.f32 1.0, %v373
        %v378 = vlog2.pop %v377
        %v379 = vmul.f32 %v378, 0.6931472
        %v380 = vmax.f32 %v379, -100.0
        %v381 = vsub.f32 0.0, %v376
        %v382 = vsub.f32 0.0, %v380
        %v383 = vsel %vm334, %v381, %v382
        %v384 = vld [vmem:[#allocation2] sm:$0xff]
        %385 = vadd.xlane.f32.xlu0 %v327
        %v386 = vpop.xlane.xlu0 %385
        %v387 = vadd.f32 %v384, %v386
        %vm388 = vcmask 7168
        %389 = vst.msk [vmem:[#allocation2] sm:$0xff] %vm388, %v387
        %v390 = vsel %vm334, 1, 0
        %vm391 = vcmp.eq.s32.totalorder %v390, 1
        %vm392 = vmand %vm355, %vm391
        %v393 = vlaneseq
        %v394 = vshrl.u32 %v393, 7
        %v395 = vsub.s32 0, %v394
        %v396 = vrot.slane %v383, %v395
        %v397 = vsel %vm392, %v396, 0.0
        %v398 = vld [vmem:[#allocation3] sm:$0xff]
        %399 = vadd.xlane.f32.xlu0 %v397
        %v400 = vpop.xlane.xlu0 %399
        %v401 = vadd.f32 %v398, %v400
        %402 = vst.msk [vmem:[#allocation3] sm:$0xff] %vm388, %v401
        %s403 = sld [smem:[#allocation4]]
        %v404 = vsel %vm334, 1.0, 0.0
        %vm405 = vcmask 1040384
        %v406 = vsel %vm405, %v404, 0.0
        %407 = vadd.xlane.f32.xlu0 %v406
        %v408 = vpop.xlane.xlu0 %407
        %v409 = vrot.slane %v408, 4
        %v410 = vadd.f32 %v408, %v409
        %v411 = vrot.slane %v410, 2
        %v412 = vadd.f32 %v410, %v411
        %v413 = vrot.slane %v412, 1
        %v414 = vadd.f32 %v412, %v413
        %s415 = vtos %v414
        %s416 = sadd.f32 %s403, %s415
        %s417 = scalar_lea.smem [#allocation4], 0
        %418 = sst [smem:[%s417]] %s416
        %s419 = sld [smem:[#allocation4 + $0x1]]
        %v420 = vsel %vm405, %v383, 0.0
        %421 = vadd.xlane.f32.xlu0 %v420
        %v422 = vpop.xlane.xlu0 %421
        %v423 = vrot.slane %v422, 4
        %v424 = vadd.f32 %v422, %v423
        %v425 = vrot.slane %v424, 2
        %v426 = vadd.f32 %v424, %v425
        %v427 = vrot.slane %v426, 1
        %v428 = vadd.f32 %v426, %v427
        %s429 = vtos %v428
        %s430 = sadd.f32 %s419, %s429
        %s431 = scalar_lea.smem [#allocation4], 1
        %432 = sst [smem:[%s431]] %s430
        // Predicated region
        $region37: #{tpu_custom_call.1} parent=31 // pred_check
          %p433 = pneg %p265
        $region38: #{tpu_custom_call.1} parent=31 // pred_check_branch
          %435 = sbr.rel (%p433) target = $region40
        $region39: #{tpu_custom_call.1} parent=31 // pred_region
          %v436 = vld [vmem:[#allocation2] sm:$0xff]
          %v437 = vld [vmem:[#allocation3] sm:$0xff]
          %v438 = vsel %vm388, %v437, 0.0
          %439 = vadd.xlane.f32.xlu0 %v438
          %v440 = vpop.xlane.xlu0 %439
          %v441 = vrot.slane %v440, 4
          %v442 = vadd.f32 %v440, %v441
          %v443 = vrot.slane %v442, 2
          %v444 = vadd.f32 %v442, %v443
          %v445 = vrot.slane %v444, 1
          %v446 = vadd.f32 %v444, %v445
          %s447 = vtos %v446
          %v448 = vmax.f32 %v436, 1.0
          %v449 = vrcp.pop %v448
          %v450 = vmul.f32 %v437, %v449
          %v451 = vsel %vm388, %v450, 0.0
          %452 = vadd.xlane.f32.xlu0 %v451
          %v453 = vpop.xlane.xlu0 %452
          %v454 = vrot.slane %v453, 4
          %v455 = vadd.f32 %v453, %v454
          %v456 = vrot.slane %v455, 2
          %v457 = vadd.f32 %v455, %v456
          %v458 = vrot.slane %v457, 1
          %v459 = vadd.f32 %v457, %v458
          %s460 = vtos %v459
          %s461 = sld [smem:[#allocation4]]
          %s462 = sld [smem:[#allocation4 + $0x1]]
          %s463 = ssub.f32 %s462, %s447
          %v464 = vlaneseq
          %v465 = vand.u32 %v464, 127
          %vm466 = vcmp.eq.s32.totalorder %v465, 0
          %v467 = vstv %s461
          %v468 = vsel %vm466, %v467, 0.0
          %vm469 = vcmp.eq.s32.totalorder %v465, 1
          %v470 = vstv %s462
          %v471 = vsel %vm469, %v470, 0.0
          %v472 = vadd.f32 %v468, %v471
          %vm473 = vcmp.eq.s32.totalorder %v465, 2
          %v474 = vstv %s460
          %v475 = vsel %vm473, %v474, 0.0
          %v476 = vadd.f32 %v472, %v475
          %vm477 = vcmp.eq.s32.totalorder %v465, 3
          %v478 = vstv %s463
          %v479 = vsel %vm477, %v478, 0.0
          %v480 = vadd.f32 %v476, %v479
          %481 = vst [vmem:[%s250] sm:$0x1] %v480
        $region40: #{tpu_custom_call.1} parent=31 // pred_fallthru
          _
        %s482 = sand.u32 %s131, 1
        %s483 = scalar_lea.sflag [#allocation8], %s482
        %s484 = sand.u32 %s131, 1
        %s485 = scalar_lea.vmem [#allocation7], %s484
        %s486 = sand.u32 %s157, 1
        %s487 = scalar_lea.sflag [#allocation10], %s486
        %s488 = sand.u32 %s157, 1
        %s489 = scalar_lea.vmem [#allocation9], %s488
        // Predicated region
        $region41: #{tpu_custom_call.1} parent=31 // pred_check
          %p490 = pneg %p141
        $region42: #{tpu_custom_call.1} parent=31 // pred_check_branch
          %492 = sbr.rel (%p490) target = $region44
        $region43: #{tpu_custom_call.1} parent=31 // pred_region
          %s494 = ssub.s32 16, 16
          %495 = vsyncadd %s483, %s494
          %s496 = sadd.s32 %s34, %s33
          %s497 = smul.addr %s496, 16
          %s498 = scalar_lea.hbm %s4, %s497
          %s500 = sshll.u32 %s485, 4
          %s501 = int_to_ptr.vmem [resolvable:$true] %s500
          %503 = dma.vmem_to_hbm [thread:$0]  %s501, 16, %s498, %s483
        $region44: #{tpu_custom_call.1} parent=31 // pred_fallthru
          _
        // Predicated region
        $region45: #{tpu_custom_call.1} parent=31 // pred_check
          %p504 = pneg %p167
        $region46: #{tpu_custom_call.1} parent=31 // pred_check_branch
          %506 = sbr.rel (%p504) target = $region48
        $region47: #{tpu_custom_call.1} parent=31 // pred_region
          %s508 = ssub.s32 16, 16
          %509 = vsyncadd %s487, %s508
          %s510 = smul.addr %s33, 16
          %s511 = scalar_lea.hbm %s5, %s510
          %s513 = sshll.u32 %s489, 4
          %s514 = int_to_ptr.vmem [resolvable:$true] %s513
          %516 = dma.vmem_to_hbm [thread:$0]  %s514, 16, %s511, %s487
        $region48: #{tpu_custom_call.1} parent=31 // pred_fallthru
          _
      $region32: #{tpu_custom_call.1} parent=5 // pred_fallthru
        _
      %p517 = scmp.le.s32.totalorder 2, %s24
      // Predicated region
      $region49: #{tpu_custom_call.1} parent=5 // pred_check
        %p518 = pneg %p517
      $region50: #{tpu_custom_call.1} parent=5 // pred_check_branch
        %520 = sbr.rel (%p518) target = $region52
      $region51: #{tpu_custom_call.1} parent=5 // pred_region
        %s521 = ssub.s32 %s24, 2
        // Predicated region
        $region53: #{tpu_custom_call.1} parent=51 // pred_check
          %p522 = pneg %p147
        $region54: #{tpu_custom_call.1} parent=51 // pred_check_branch
          %524 = sbr.rel (%p522) target = $region56
        $region55: #{tpu_custom_call.1} parent=51 // pred_region
          %s525 = sand.u32 %s132, 1
          %s526 = scalar_lea.sflag [#allocation8], %s525
          %s527 = sand.u32 %s132, 1
          %s528 = scalar_lea.vmem [#allocation7], %s527
          %529 = dma.done %s526, 16
        $region56: #{tpu_custom_call.1} parent=51 // pred_fallthru
          _
        // Predicated region
        $region57: #{tpu_custom_call.1} parent=51 // pred_check
          %p530 = pneg %p173
        $region58: #{tpu_custom_call.1} parent=51 // pred_check_branch
          %532 = sbr.rel (%p530) target = $region60
        $region59: #{tpu_custom_call.1} parent=51 // pred_region
          %s533 = sand.u32 %s158, 1
          %s534 = scalar_lea.sflag [#allocation10], %s533
          %s535 = sand.u32 %s158, 1
          %s536 = scalar_lea.vmem [#allocation9], %s535
          %537 = dma.done %s534, 16
        $region60: #{tpu_custom_call.1} parent=51 // pred_fallthru
          _
      $region52: #{tpu_custom_call.1} parent=5 // pred_fallthru
        _
    $region6: #{tpu_custom_call.1} parent=1 // loop_footer
      %s28 = sadd.s32 1, %s24
    $region7: #{tpu_custom_call.1} parent=1 // loop_footer_branch
      %23 = sbr.rel target = $region3
    $region8: #{tpu_custom_call.1} parent=1 // loop_exit
      _
    %538 = vsyncpa [#allocation8], 1
    %s539 = scalar_lea.sflag [#allocation8], 1
    %540 = vsyncpa %s539, 1
    %541 = vsyncpa [#allocation10], 1
    %s542 = scalar_lea.sflag [#allocation10], 1
    %543 = vsyncpa %s542, 1

</llo_original>
